<compile_context>
chip_gen: v5e
topology: v5e:2x2
jax: 0.10.0
libtpu: 0.0.40
codegen_flags: <defaults>
</compile_context>

<pallas_src>
import functools

import jax
import jax.numpy as jnp
from jax.experimental import pallas as pl
from jax.experimental.pallas import tpu as pltpu


def _l2_normalize(x):
    # F.normalize(x, p=2, dim=1): x / max(||x||, 1e-12) == x * rsqrt(max(||x||^2, 1e-24))
    sq = jnp.sum(x * x, axis=1, keepdims=True)
    return x * jax.lax.rsqrt(jnp.maximum(sq, jnp.float32(1e-24)))


def _infonce_decoupling_kernel(
        margin_ref, tu_ref, tsh_ref, ts_ref, out_ref,
        ts_n_ref, zcol_ref, colsum_ref, rowacc_ref, zacc_ref,
        *, inv_temperature: float, n_valid: int, tile_m: int):
    f32 = jnp.float32
    i = pl.program_id(0)
    n_tiles = pl.num_programs(0)
    n_tot = ts_ref.shape[0]
    n_pad = n_tot - n_valid          # static number of zero-padded rows
    it = f32(inv_temperature)
    single_tile = (tile_m == n_tot)  # static

    # ---- one-time init: normalize ts into resident VMEM, zero accumulators ----
    @pl.when(i == 0)
    def _init():
        ts_n_ref[...] = _l2_normalize(ts_ref[...].astype(f32))
        colsum_ref[...] = jnp.zeros_like(colsum_ref)
        rowacc_ref[...] = jnp.zeros_like(rowacc_ref)
        zacc_ref[...] = jnp.zeros_like(zacc_ref)

    margin = margin_ref[0, 0]
    row0 = pl.multiple_of(i * tile_m, tile_m)

    # ---- per-tile normalization; 1/temperature folded into the LHS operand ----
    tu = tu_ref[...].astype(f32)                                    # (tile_m, E)
    tu_sq = jnp.sum(tu * tu, axis=1, keepdims=True)
    tu_s = tu * (jax.lax.rsqrt(jnp.maximum(tu_sq, f32(1e-24))) * it)

    tsh_n = _l2_normalize(tsh_ref[...].astype(f32))                 # (tile_m, E)
    ts_n = ts_n_ref[...]                                            # (n_tot, E)
    if single_tile:
        ts_n_tile = ts_n
    else:
        ts_n_tile = ts_n_ref[pl.ds(row0, tile_m), :]

    # Only diag(sim_shared) is ever used -> row-wise dot, no second (N,N) matmul.
    diag_sh = jnp.sum(tsh_n * ts_n_tile, axis=1, keepdims=True)     # (tile_m, 1)
    z = (diag_sh - margin) * it                                     # (tile_m, 1)
    d = jnp.exp(z)                                                  # (tile_m, 1)
    if single_tile:
        zcol_ref[...] = z
    else:
        zcol_ref[pl.ds(row0, tile_m), :] = z

    # sim_unique tile on the MXU (f32 operands, module semantics); the scale by
    # 1/temperature is already folded into tu_s.
    sim = jax.lax.dot_general(
        tu_s, ts_n,
        dimension_numbers=(((1,), (1,)), ((), ())),
        preferred_element_type=f32)                                 # (tile_m, n_tot)
    exp_u = jnp.exp(sim)                                            # the only big temp

    rowsum = jnp.sum(exp_u, axis=1, keepdims=True)                  # (tile_m, 1)  XLU
    col_part = jnp.sum(exp_u, axis=0, keepdims=True)                # (1, n_tot)   XLU
    colsum_ref[...] += col_part

    if n_pad:
        # Each zero-padded ts row contributes exactly exp(0) = 1 per row.
        rowsum = rowsum - f32(n_pad)
    row_terms = jnp.log(rowsum + d) - z                             # (tile_m, 1)

    if n_pad:
        gid = jax.lax.broadcasted_iota(jnp.int32, (tile_m, 1), 0) + row0
        rmask = (gid < n_valid).astype(f32)
        row_terms = row_terms * rmask
        z = z * rmask
    rowacc_ref[...] += jnp.sum(row_terms, axis=0, keepdims=True)    # (1, 1)
    zacc_ref[...] += jnp.sum(z, axis=0, keepdims=True)              # (1, 1)

    # ---- finalize: column-side terms from the accumulated colsum ----
    @pl.when(i == n_tiles - 1)
    def _finalize():
        colsum = colsum_ref[...]                                    # (1, n_tot)
        if n_pad:
            # Each zero-padded tab_unique row added exp(0) = 1 to every column.
            colsum = colsum - f32(n_pad)
        z_row = jnp.transpose(zcol_ref[...])                        # (1, n_tot)
        col_terms = jnp.log(colsum + jnp.exp(z_row))                # (1, n_tot)
        if n_pad:
            cid = jax.lax.broadcasted_iota(jnp.int32, (1, n_tot), 1)
            col_terms = jnp.where(cid < n_valid, col_terms, f32(0.0))
        # loss = [ sum_i (log(rowsum_i+d_i) - z_i)
        #        + sum_j  log(colsum_j+d_j) - sum_j z_j ] / (2 n)
        total = (rowacc_ref[...]
                 + jnp.sum(col_terms, axis=1, keepdims=True)
                 - zacc_ref[...])                                   # (1, 1)
        out_ref[0, 0] = jnp.sum(total) * f32(0.5 / n_valid)


def learn_margin_infonce_loss_decoupling(tab_unique, tab_shared, ts, margin,
                                         temperature: float = 0.1,
                                         tile_m: int = 256):
    """JAX/Pallas equivalent of LearnMarginInfoNCELossDecoupling.forward."""
    n, e = tab_unique.shape
    assert tab_shared.shape == (n, e) and ts.shape == (n, e)

    # Row tiling: one full-size tile for small batches; otherwise pad the batch
    # (rows only — never the embedding dim) to a multiple of tile_m and mask
    # the padded rows inside the kernel.
    if n <= tile_m:
        tile_m = n
        n_tot = n
    else:
        n_tot = ((n + tile_m - 1) // tile_m) * tile_m
        if n_tot != n:
            pad = ((0, n_tot - n), (0, 0))
            tab_unique = jnp.pad(tab_unique, pad)
            tab_shared = jnp.pad(tab_shared, pad)
            ts = jnp.pad(ts, pad)
    n_tiles = n_tot // tile_m

    margin_arr = jnp.asarray(margin, dtype=jnp.float32).reshape(1, 1)

    kernel = functools.partial(
        _infonce_decoupling_kernel,
        inv_temperature=float(1.0 / temperature),
        n_valid=n, tile_m=tile_m)

    itemsize = jnp.dtype(tab_unique.dtype).itemsize

    # Generation-aware VMEM limit (v7x has only 64 MiB physical VMEM).
    try:
        vmem_cap = int(pltpu.get_tpu_info().vmem_capacity_bytes)
    except Exception:
        vmem_cap = 64 * 2**20
    need = (4 * (2 * n_tot * e             # normalized-ts scratch + resident ts
                 + 4 * tile_m * e          # tu/tsh tiles (double-buffered, f32 bound)
                 + 3 * tile_m * n_tot      # sim / exp temporaries + slack
                 + 16 * n_tot + 64)        # colsum / zcol / scalar scratches
            + 2 * n_tot * e * itemsize)    # raw-dtype input buffering slack
    vmem_limit = int(min(int(0.75 * vmem_cap), max(32 * 2**20, 2 * need)))

    cost = pl.CostEstimate(
        flops=int(2 * n_tot * n_tot * e + 4 * n_tot * n_tot + 8 * n_tot * e),
        transcendentals=int(n_tot * n_tot + 6 * n_tot),
        bytes_accessed=int(3 * n_tot * e * itemsize + 16),
    )

    out = pl.pallas_call(
        kernel,
        out_shape=jax.ShapeDtypeStruct((1, 1), jnp.float32),
        grid=(n_tiles,),
        in_specs=[
            pl.BlockSpec(memory_space=pltpu.MemorySpace.SMEM),        # margin scalar
            pl.BlockSpec((tile_m, e), lambda i: (i, 0),
                         pipeline_mode=pl.Buffered(2)),               # tab_unique tile
            pl.BlockSpec((tile_m, e), lambda i: (i, 0),
                         pipeline_mode=pl.Buffered(2)),               # tab_shared tile
            pl.BlockSpec((n_tot, e), lambda i: (0, 0)),               # ts (resident)
        ],
        out_specs=pl.BlockSpec(memory_space=pltpu.MemorySpace.SMEM),  # scalar loss
        scratch_shapes=[
            pltpu.VMEM((n_tot, e), jnp.float32),   # normalized ts
            pltpu.VMEM((n_tot, 1), jnp.float32),   # z = (diag_shared - margin)/T
            pltpu.VMEM((1, n_tot), jnp.float32),   # exp(sim_unique) column-sum acc
            pltpu.VMEM((1, 1), jnp.float32),       # row-side loss accumulator
            pltpu.VMEM((1, 1), jnp.float32),       # sum(z) accumulator
        ],
        compiler_params=pltpu.CompilerParams(
            dimension_semantics=("arbitrary",),
            vmem_limit_bytes=vmem_limit),
        cost_estimate=cost,
    )(margin_arr, tab_unique, tab_shared, ts)
    return out[0, 0]


def _reference_loss(tab_unique, tab_shared, ts, margin, temperature):
    """Pure-f32 JAX mirror of the PyTorch forward (true module semantics)."""
    hi = jax.lax.Precision.HIGHEST

    def l2(x):
        return x / jnp.maximum(jnp.linalg.norm(x, axis=1, keepdims=True), 1e-12)

    tu, tsh, tsn = l2(tab_unique), l2(tab_shared), l2(ts)
    sim_shared = jnp.dot(tsh, tsn.T, precision=hi)
    sim_unique = jnp.dot(tu, tsn.T, precision=hi)
    n = sim_shared.shape[0]
    sim_shared = (sim_shared - margin * jnp.eye(n, dtype=jnp.float32)) / temperature
    sim_unique = sim_unique / temperature
    e_shared = jnp.exp(sim_shared)
    e_unique = jnp.exp(sim_unique)
    d = jnp.diagonal(e_shared)
    loss_u = -jnp.mean(jnp.log(d / (jnp.sum(e_unique, axis=1) + d)))
    loss_s = -jnp.mean(jnp.log(d / (jnp.sum(e_unique, axis=0) + d)))
    return (loss_u + loss_s) / 2


if __name__ == "__main__":
    key = jax.random.PRNGKey(0)
    k1, k2, k3, k4, k5, k6 = jax.random.split(key, 6)

    temperature = 0.1   # module default
    margin = 0.1        # learnable nn.Parameter value (non-zero to exercise it)

    # Small shapes consistent with the module: batch N=8, embedding E=32.
    N, E = 8, 32
    tab_unique = jax.random.normal(k1, (N, E), dtype=jnp.float32)
    tab_shared = jax.random.normal(k2, (N, E), dtype=jnp.float32)
    ts = jax.random.normal(k3, (N, E), dtype=jnp.float32)

    loss = learn_margin_infonce_loss_decoupling(
        tab_unique, tab_shared, ts, margin, temperature=temperature)
    loss = jax.block_until_ready(loss)
    ref = _reference_loss(tab_unique, tab_shared, ts, margin, temperature)
    assert jnp.allclose(loss, ref, rtol=1e-2, atol=1e-2), (loss, ref)

    # Exercise the row-tiled / padded-batch path (multiple grid steps + masks).
    N2, E2 = 300, 64
    tu2 = jax.random.normal(k4, (N2, E2), dtype=jnp.float32)
    tsh2 = jax.random.normal(k5, (N2, E2), dtype=jnp.float32)
    ts2 = jax.random.normal(k6, (N2, E2), dtype=jnp.float32)
    loss2 = learn_margin_infonce_loss_decoupling(
        tu2, tsh2, ts2, margin, temperature=temperature, tile_m=128)
    loss2 = jax.block_until_ready(loss2)
    ref2 = _reference_loss(tu2, tsh2, ts2, margin, temperature)
    assert jnp.allclose(loss2, ref2, rtol=1e-2, atol=1e-2), (loss2, ref2)

    print("KERNEL_OK")
</pallas_src>

<mosaic_0001>
module attributes {stable_mosaic.version = 11 : i64} {
  func.func @_infonce_decoupling_kernel(%arg0: i32, %arg1: memref<1x1xf32, #tpu.memory_space<smem>>, %arg2: memref<8x32xf32, #tpu.memory_space<vmem>>, %arg3: memref<8x32xf32, #tpu.memory_space<vmem>>, %arg4: memref<8x32xf32, #tpu.memory_space<vmem>>, %arg5: memref<1x1xf32, #tpu.memory_space<smem>>, %arg6: memref<8x32xf32, #tpu.memory_space<vmem>>, %arg7: memref<8x1xf32, #tpu.memory_space<vmem>>, %arg8: memref<1x8xf32, #tpu.memory_space<vmem>>, %arg9: memref<1x1xf32, #tpu.memory_space<vmem>>, %arg10: memref<1x1xf32, #tpu.memory_space<vmem>>) attributes {dimension_semantics = [#tpu.dimension_semantics<arbitrary>], iteration_bounds = array<i64: 1>, scalar_prefetch = 0 : i64, scratch_operands = 5 : i64, tpu.core_type = #tpu.core_type<tc>, window_params = [{transform_indices = @transform_0, window_bounds = array<i64: 1, 1>}, {pipeline_mode = #tpu.pipeline_mode<double_buffered>, transform_indices = @transform_1, window_bounds = array<i64: 8, 32>}, {pipeline_mode = #tpu.pipeline_mode<double_buffered>, transform_indices = @transform_2, window_bounds = array<i64: 8, 32>}, {pipeline_mode = #tpu.pipeline_mode<synchronous>, transform_indices = @transform_3, window_bounds = array<i64: 8, 32>}, {transform_indices = @transform_4, window_bounds = array<i64: 1, 1>}]} {
    %c0_i32 = arith.constant 0 : i32
    %0 = arith.cmpi eq, %arg0, %c0_i32 : i32
    %1 = arith.extui %0 : i1 to i32
    %c0_i32_0 = arith.constant 0 : i32
    %2 = arith.cmpi ne, %1, %c0_i32_0 : i32
    scf.if %2 {
      %c0_35 = arith.constant 0 : index
      %c0_36 = arith.constant 0 : index
      %59 = vector.load %arg4[%c0_35, %c0_36] : memref<8x32xf32, #tpu.memory_space<vmem>>, vector<8x32xf32>
      %60 = arith.mulf %59, %59 : vector<8x32xf32>
      %cst_37 = arith.constant dense<0.000000e+00> : vector<8xf32>
      %61 = vector.multi_reduction <add>, %60, %cst_37 [1] : vector<8x32xf32> to vector<8xf32>
      %62 = vector.shape_cast %61 : vector<8xf32> to vector<8x1xf32>
      %cst_38 = arith.constant 1.000000e-24 : f32
      %63 = vector.broadcast %cst_38 : f32 to vector<8x1xf32>
      %64 = arith.maximumf %62, %63 : vector<8x1xf32>
      %65 = math.rsqrt %64 : vector<8x1xf32>
      %66 = vector.broadcast %65 : vector<8x1xf32> to vector<8x32xf32>
      %67 = arith.mulf %59, %66 : vector<8x32xf32>
      %c0_39 = arith.constant 0 : index
      %c0_40 = arith.constant 0 : index
      %68 = vector.load %arg6[%c0_39, %c0_40] : memref<8x32xf32, #tpu.memory_space<vmem>>, vector<8x32xf32>
      tpu.vector_store %arg6[%c0_39, %c0_40], %67 {strides = array<i32>} : memref<8x32xf32, #tpu.memory_space<vmem>>, vector<8x32xf32>,
      %cst_41 = arith.constant 0.000000e+00 : f32
      %69 = vector.broadcast %cst_41 : f32 to vector<1x8xf32>
      %c0_42 = arith.constant 0 : index
      %c0_43 = arith.constant 0 : index
      %70 = vector.load %arg8[%c0_42, %c0_43] : memref<1x8xf32, #tpu.memory_space<vmem>>, vector<1x8xf32>
      tpu.vector_store %arg8[%c0_42, %c0_43], %69 {strides = array<i32>} : memref<1x8xf32, #tpu.memory_space<vmem>>, vector<1x8xf32>,
      %cst_44 = arith.constant 0.000000e+00 : f32
      %71 = vector.broadcast %cst_44 : f32 to vector<1x1xf32>
      %c0_45 = arith.constant 0 : index
      %c0_46 = arith.constant 0 : index
      %72 = vector.load %arg9[%c0_45, %c0_46] : memref<1x1xf32, #tpu.memory_space<vmem>>, vector<1x1xf32>
      tpu.vector_store %arg9[%c0_45, %c0_46], %71 {strides = array<i32>} : memref<1x1xf32, #tpu.memory_space<vmem>>, vector<1x1xf32>,
      %cst_47 = arith.constant 0.000000e+00 : f32
      %73 = vector.broadcast %cst_47 : f32 to vector<1x1xf32>
      %c0_48 = arith.constant 0 : index
      %c0_49 = arith.constant 0 : index
      %74 = vector.load %arg10[%c0_48, %c0_49] : memref<1x1xf32, #tpu.memory_space<vmem>>, vector<1x1xf32>
      tpu.vector_store %arg10[%c0_48, %c0_49], %73 {strides = array<i32>} : memref<1x1xf32, #tpu.memory_space<vmem>>, vector<1x1xf32>,
    } else {
    }
    %c0 = arith.constant 0 : index
    %c0_1 = arith.constant 0 : index
    %3 = memref.load %arg1[%c0, %c0_1] : memref<1x1xf32, #tpu.memory_space<smem>>
    %c0_2 = arith.constant 0 : index
    %c0_3 = arith.constant 0 : index
    %4 = vector.load %arg2[%c0_2, %c0_3] : memref<8x32xf32, #tpu.memory_space<vmem>>, vector<8x32xf32>
    %5 = arith.mulf %4, %4 : vector<8x32xf32>
    %cst = arith.constant dense<0.000000e+00> : vector<8xf32>
    %6 = vector.multi_reduction <add>, %5, %cst [1] : vector<8x32xf32> to vector<8xf32>
    %7 = vector.shape_cast %6 : vector<8xf32> to vector<8x1xf32>
    %cst_4 = arith.constant 1.000000e-24 : f32
    %8 = vector.broadcast %cst_4 : f32 to vector<8x1xf32>
    %9 = arith.maximumf %7, %8 : vector<8x1xf32>
    %10 = math.rsqrt %9 : vector<8x1xf32>
    %cst_5 = arith.constant 1.000000e+01 : f32
    %11 = vector.broadcast %cst_5 : f32 to vector<8x1xf32>
    %12 = arith.mulf %10, %11 : vector<8x1xf32>
    %13 = vector.broadcast %12 : vector<8x1xf32> to vector<8x32xf32>
    %14 = arith.mulf %4, %13 : vector<8x32xf32>
    %c0_6 = arith.constant 0 : index
    %c0_7 = arith.constant 0 : index
    %15 = vector.load %arg3[%c0_6, %c0_7] : memref<8x32xf32, #tpu.memory_space<vmem>>, vector<8x32xf32>
    %16 = arith.mulf %15, %15 : vector<8x32xf32>
    %cst_8 = arith.constant dense<0.000000e+00> : vector<8xf32>
    %17 = vector.multi_reduction <add>, %16, %cst_8 [1] : vector<8x32xf32> to vector<8xf32>
    %18 = vector.shape_cast %17 : vector<8xf32> to vector<8x1xf32>
    %cst_9 = arith.constant 1.000000e-24 : f32
    %19 = vector.broadcast %cst_9 : f32 to vector<8x1xf32>
    %20 = arith.maximumf %18, %19 : vector<8x1xf32>
    %21 = math.rsqrt %20 : vector<8x1xf32>
    %22 = vector.broadcast %21 : vector<8x1xf32> to vector<8x32xf32>
    %23 = arith.mulf %15, %22 : vector<8x32xf32>
    %c0_10 = arith.constant 0 : index
    %c0_11 = arith.constant 0 : index
    %24 = vector.load %arg6[%c0_10, %c0_11] : memref<8x32xf32, #tpu.memory_space<vmem>>, vector<8x32xf32>
    %25 = arith.mulf %23, %24 : vector<8x32xf32>
    %cst_12 = arith.constant dense<0.000000e+00> : vector<8xf32>
    %26 = vector.multi_reduction <add>, %25, %cst_12 [1] : vector<8x32xf32> to vector<8xf32>
    %27 = vector.shape_cast %26 : vector<8xf32> to vector<8x1xf32>
    %28 = vector.broadcast %3 : f32 to vector<8x1xf32>
    %29 = arith.subf %27, %28 : vector<8x1xf32>
    %cst_13 = arith.constant 1.000000e+01 : f32
    %30 = vector.broadcast %cst_13 : f32 to vector<8x1xf32>
    %31 = arith.mulf %29, %30 : vector<8x1xf32>
    %32 = math.exp %31 : vector<8x1xf32>
    %c0_14 = arith.constant 0 : index
    %c0_15 = arith.constant 0 : index
    %33 = vector.load %arg7[%c0_14, %c0_15] : memref<8x1xf32, #tpu.memory_space<vmem>>, vector<8x1xf32>
    tpu.vector_store %arg7[%c0_14, %c0_15], %31 {strides = array<i32>} : memref<8x1xf32, #tpu.memory_space<vmem>>, vector<8x1xf32>,
    %cst_16 = arith.constant dense<0.000000e+00> : vector<8x8xf32>
    %34 = tpu.matmul %14, %24, %cst_16 {dimension_numbers = #tpu.dot_dimension_numbers<[1], [1], [0], [0], [0, 0, 1, 0], [], []>} : vector<8x32xf32>, vector<8x32xf32>, vector<8x8xf32> -> vector<8x8xf32>
    %35 = math.exp %34 : vector<8x8xf32>
    %cst_17 = arith.constant dense<0.000000e+00> : vector<8xf32>
    %36 = vector.multi_reduction <add>, %35, %cst_17 [1] : vector<8x8xf32> to vector<8xf32>
    %37 = vector.shape_cast %36 : vector<8xf32> to vector<8x1xf32>
    %cst_18 = arith.constant dense<0.000000e+00> : vector<8xf32>
    %38 = vector.multi_reduction <add>, %35, %cst_18 [0] : vector<8x8xf32> to vector<8xf32>
    %39 = vector.shape_cast %38 : vector<8xf32> to vector<1x8xf32>
    %c0_19 = arith.constant 0 : index
    %c0_20 = arith.constant 0 : index
    %40 = vector.load %arg8[%c0_19, %c0_20] : memref<1x8xf32, #tpu.memory_space<vmem>>, vector<1x8xf32>
    %41 = arith.addf %40, %39 : vector<1x8xf32>
    %c0_21 = arith.constant 0 : index
    %c0_22 = arith.constant 0 : index
    %42 = vector.load %arg8[%c0_21, %c0_22] : memref<1x8xf32, #tpu.memory_space<vmem>>, vector<1x8xf32>
    tpu.vector_store %arg8[%c0_21, %c0_22], %41 {strides = array<i32>} : memref<1x8xf32, #tpu.memory_space<vmem>>, vector<1x8xf32>,
    %43 = arith.addf %37, %32 : vector<8x1xf32>
    %44 = math.log %43 : vector<8x1xf32>
    %45 = arith.subf %44, %31 : vector<8x1xf32>
    %c0_23 = arith.constant 0 : index
    %c0_24 = arith.constant 0 : index
    %46 = vector.load %arg9[%c0_23, %c0_24] : memref<1x1xf32, #tpu.memory_space<vmem>>, vector<1x1xf32>
    %cst_25 = arith.constant dense<0.000000e+00> : vector<1xf32>
    %47 = vector.multi_reduction <add>, %45, %cst_25 [0] : vector<8x1xf32> to vector<1xf32>
    %48 = vector.shape_cast %47 : vector<1xf32> to vector<1x1xf32>
    %49 = arith.addf %46, %48 : vector<1x1xf32>
    %c0_26 = arith.constant 0 : index
    %c0_27 = arith.constant 0 : index
    %50 = vector.load %arg9[%c0_26, %c0_27] : memref<1x1xf32, #tpu.memory_space<vmem>>, vector<1x1xf32>
    tpu.vector_store %arg9[%c0_26, %c0_27], %49 {strides = array<i32>} : memref<1x1xf32, #tpu.memory_space<vmem>>, vector<1x1xf32>,
    %c0_28 = arith.constant 0 : index
    %c0_29 = arith.constant 0 : index
    %51 = vector.load %arg10[%c0_28, %c0_29] : memref<1x1xf32, #tpu.memory_space<vmem>>, vector<1x1xf32>
    %cst_30 = arith.constant dense<0.000000e+00> : vector<1xf32>
    %52 = vector.multi_reduction <add>, %31, %cst_30 [0] : vector<8x1xf32> to vector<1xf32>
    %53 = vector.shape_cast %52 : vector<1xf32> to vector<1x1xf32>
    %54 = arith.addf %51, %53 : vector<1x1xf32>
    %c0_31 = arith.constant 0 : index
    %c0_32 = arith.constant 0 : index
    %55 = vector.load %arg10[%c0_31, %c0_32] : memref<1x1xf32, #tpu.memory_space<vmem>>, vector<1x1xf32>
    tpu.vector_store %arg10[%c0_31, %c0_32], %54 {strides = array<i32>} : memref<1x1xf32, #tpu.memory_space<vmem>>, vector<1x1xf32>,
    %c0_i32_33 = arith.constant 0 : i32
    %56 = arith.cmpi eq, %arg0, %c0_i32_33 : i32
    %57 = arith.extui %56 : i1 to i32
    %c0_i32_34 = arith.constant 0 : i32
    %58 = arith.cmpi ne, %57, %c0_i32_34 : i32
    scf.if %58 {
      %c0_35 = arith.constant 0 : index
      %c0_36 = arith.constant 0 : index
      %59 = vector.load %arg8[%c0_35, %c0_36] : memref<1x8xf32, #tpu.memory_space<vmem>>, vector<1x8xf32>
      %c0_37 = arith.constant 0 : index
      %c0_38 = arith.constant 0 : index
      %60 = vector.load %arg7[%c0_37, %c0_38] : memref<8x1xf32, #tpu.memory_space<vmem>>, vector<8x1xf32>
      %61 = tpu.transpose %60, [1, 0] : vector<8x1xf32> -> vector<1x8xf32>
      %62 = math.exp %61 : vector<1x8xf32>
      %63 = arith.addf %59, %62 : vector<1x8xf32>
      %64 = math.log %63 : vector<1x8xf32>
      %c0_39 = arith.constant 0 : index
      %c0_40 = arith.constant 0 : index
      %65 = vector.load %arg9[%c0_39, %c0_40] : memref<1x1xf32, #tpu.memory_space<vmem>>, vector<1x1xf32>
      %cst_41 = arith.constant dense<0.000000e+00> : vector<1xf32>
      %66 = vector.multi_reduction <add>, %64, %cst_41 [1] : vector<1x8xf32> to vector<1xf32>
      %67 = vector.shape_cast %66 : vector<1xf32> to vector<1x1xf32>
      %68 = arith.addf %65, %67 : vector<1x1xf32>
      %c0_42 = arith.constant 0 : index
      %c0_43 = arith.constant 0 : index
      %69 = vector.load %arg10[%c0_42, %c0_43] : memref<1x1xf32, #tpu.memory_space<vmem>>, vector<1x1xf32>
      %70 = arith.subf %68, %69 : vector<1x1xf32>
      %71 = vector.shape_cast %70 : vector<1x1xf32> to vector<1x1x1xf32>
      %cst_44 = arith.constant dense<0.000000e+00> : vector<1xf32>
      %72 = vector.multi_reduction <add>, %71, %cst_44 [1, 2] : vector<1x1x1xf32> to vector<1xf32>
      %73 = vector.shape_cast %72 : vector<1xf32> to vector<1x1x1xf32>
      %74 = vector.extract %73[0, 0, 0] : f32 from vector<1x1x1xf32>
      %cst_45 = arith.constant 6.250000e-02 : f32
      %75 = arith.mulf %74, %cst_45 : f32
      %c0_46 = arith.constant 0 : index
      %c0_47 = arith.constant 0 : index
      %76 = memref.load %arg5[%c0_46, %c0_47] : memref<1x1xf32, #tpu.memory_space<smem>>
      memref.store %75, %arg5[%c0_46, %c0_47] : memref<1x1xf32, #tpu.memory_space<smem>>
    } else {
    }
    return
  }
  func.func @transform_0(%arg0: i32) -> (i32, i32) {
    %c0_i32 = arith.constant 0 : i32
    %c0_i32_0 = arith.constant 0 : i32
    %c0_i32_1 = arith.constant 0 : i32
    return %c0_i32, %c0_i32_0 : i32, i32
  }
  func.func @transform_1(%arg0: i32) -> (i32, i32) {
    %c0_i32 = arith.constant 0 : i32
    %c0_i32_0 = arith.constant 0 : i32
    return %arg0, %c0_i32 : i32, i32
  }
  func.func @transform_2(%arg0: i32) -> (i32, i32) {
    %c0_i32 = arith.constant 0 : i32
    %c0_i32_0 = arith.constant 0 : i32
    return %arg0, %c0_i32 : i32, i32
  }
  func.func @transform_3(%arg0: i32) -> (i32, i32) {
    %c0_i32 = arith.constant 0 : i32
    %c0_i32_0 = arith.constant 0 : i32
    %c0_i32_1 = arith.constant 0 : i32
    return %c0_i32, %c0_i32_0 : i32, i32
  }
  func.func @transform_4(%arg0: i32) -> (i32, i32) {
    %c0_i32 = arith.constant 0 : i32
    %c0_i32_0 = arith.constant 0 : i32
    %c0_i32_1 = arith.constant 0 : i32
    return %c0_i32, %c0_i32_0 : i32, i32
  }
}

</mosaic_0001>

<llo_original>
// kernel: tpu_custom_call.1
$region0: #{tpu_custom_call.1}
  #allocation0 [shape = 'u32[]', space=smem, size = 0x4, offset = 0x4, fixed_abs, tag = 'smem constant byte address 0x4 - core index']
  #allocation1 [shape = 'u32[72,128]{1,0:T(1,128)}', space=vmem, size = 0x9000, scoped, tag = 'internal scratch']
  #allocation2 [shape = 'f32[8,32]{1,0:T(8,128)}', space=vmem, size = 0x1000, scoped, tag = 'scratch operand']
  #allocation3 [shape = 'f32[8,1]{1,0:T(8,128)}', space=vmem, size = 0x1000, scoped, tag = 'scratch operand']
  #allocation4 [shape = 'f32[1,8]{1,0:T(1,128)}', space=vmem, size = 0x200, scoped, tag = 'scratch operand']
  #allocation5 [shape = 'f32[1,1]{1,0:T(1,128)}', space=vmem, size = 0x200, scoped, tag = 'scratch operand']
  #allocation6 [shape = 'f32[1,1]{1,0:T(1,128)}', space=vmem, size = 0x200, scoped, tag = 'scratch operand']
  #allocation7 [shape = 'f32[1,1]{1,0:T(1,128)S(6)}', space=smem, size = 0x200, scoped, tag = 'scoped memory for tpu_custom_call.1']
  %s0 = inlined_call_operand.<no memory space> [shape: f32[1,1], index: 0, kind: input, shape index: {}]
  %s1 = inlined_call_operand.hbm [shape: f32[8,32], index: 1, kind: input, shape index: {}]
  %s2 = inlined_call_operand.hbm [shape: f32[8,32], index: 2, kind: input, shape index: {}]
  %s3 = inlined_call_operand.hbm [shape: f32[8,32], index: 3, kind: input, shape index: {}]
  %s4 = inlined_call_operand.hbm [shape: f32[1,1], index: 4, kind: output, shape index: {}]
  %s5 = sld [smem:[#allocation0]]
  $region46: #{tpu_custom_call.1} parent=0
    _
  %s7 = ssub.s32 1, %s5
  %s8 = scalar_select 0, %s7, %s5
  %9 = sst [smem:[#allocation7]] %s0
  $region1: #{tpu_custom_call.1} parent=0
    #allocation8 [shape = 'u8[4096]{0}', space=vmem, size = 0x1000, scoped, tag = 'input window, operand 1, single buffered']
    #allocation9 [shape = 's32[1]{0}', space=sflag, size = 0x4, scoped, tag = 'scoped memory for tpu_custom_call.1']
    #allocation10 [shape = 's32[1]{0}', space=sflag, size = 0x4, scoped, tag = 'scoped memory for tpu_custom_call.1']
    #allocation11 [shape = 'u8[4096]{0}', space=vmem, size = 0x1000, scoped, tag = 'input window, operand 2, single buffered']
    #allocation12 [shape = 's32[1]{0}', space=sflag, size = 0x4, scoped, tag = 'scoped memory for tpu_custom_call.1']
    #allocation13 [shape = 'u8[4096]{0}', space=vmem, size = 0x1000, scoped, tag = 'input window, operand 3, single buffered']
    #allocation14 [shape = 'u8[512]{0}', space=smem, size = 0x200, scoped, tag = 'output window, operand 0, single buffered']
    %10 = vsyncpa [#allocation9], 0
    %11 = vsyncpa [#allocation12], 0
    %12 = vsyncpa [#allocation10], 0
    // Predicated region
    $region2: #{tpu_custom_call.1} parent=1 // pred_check
      _
    $region3: #{tpu_custom_call.1} parent=1 // pred_check_branch
      %14 = sbr.rel (0) target = $region5
    $region4: #{tpu_custom_call.1} parent=1 // pred_region
      _
    $region5: #{tpu_custom_call.1} parent=1 // pred_fallthru
      _
    // Predicated region
    $region6: #{tpu_custom_call.1} parent=1 // pred_check
      _
    $region7: #{tpu_custom_call.1} parent=1 // pred_check_branch
      %16 = sbr.rel (0) target = $region9
    $region8: #{tpu_custom_call.1} parent=1 // pred_region
      %18 = vsyncadd [#allocation9], 0
      %s20 = sshll.u32 %s1, 4
      %s21 = int_to_ptr.hbm [resolvable:$true] %s20
      %s22 = sshll.u32 [#allocation8], 4
      %s23 = int_to_ptr.vmem [resolvable:$true] %s22
      %25 = dma.hbm_to_vmem [thread:$0]  %s21, 128, %s23, [#allocation9]
    $region9: #{tpu_custom_call.1} parent=1 // pred_fallthru
      _
    // Predicated region
    $region10: #{tpu_custom_call.1} parent=1 // pred_check
      _
    $region11: #{tpu_custom_call.1} parent=1 // pred_check_branch
      %27 = sbr.rel (0) target = $region13
    $region12: #{tpu_custom_call.1} parent=1 // pred_region
      %29 = vsyncadd [#allocation12], 0
      %s31 = sshll.u32 %s2, 4
      %s32 = int_to_ptr.hbm [resolvable:$true] %s31
      %s33 = sshll.u32 [#allocation11], 4
      %s34 = int_to_ptr.vmem [resolvable:$true] %s33
      %36 = dma.hbm_to_vmem [thread:$0]  %s32, 128, %s34, [#allocation12]
    $region13: #{tpu_custom_call.1} parent=1 // pred_fallthru
      _
    // Predicated region
    $region14: #{tpu_custom_call.1} parent=1 // pred_check
      _
    $region15: #{tpu_custom_call.1} parent=1 // pred_check_branch
      %38 = sbr.rel (0) target = $region17
    $region16: #{tpu_custom_call.1} parent=1 // pred_region
      %40 = vsyncadd [#allocation12], 0
      %s42 = sshll.u32 %s3, 4
      %s43 = int_to_ptr.hbm [resolvable:$true] %s42
      %s44 = sshll.u32 [#allocation13], 4
      %s45 = int_to_ptr.vmem [resolvable:$true] %s44
      %47 = dma.hbm_to_vmem [thread:$0]  %s43, 128, %s45, [#allocation12]
    $region17: #{tpu_custom_call.1} parent=1 // pred_fallthru
      _
    // Predicated region
    $region18: #{tpu_custom_call.1} parent=1 // pred_check
      _
    $region19: #{tpu_custom_call.1} parent=1 // pred_check_branch
      %49 = sbr.rel (0) target = $region21
    $region20: #{tpu_custom_call.1} parent=1 // pred_region
      %51 = dma.done [#allocation9], 128
    $region21: #{tpu_custom_call.1} parent=1 // pred_fallthru
      _
    // Predicated region
    $region22: #{tpu_custom_call.1} parent=1 // pred_check
      _
    $region23: #{tpu_custom_call.1} parent=1 // pred_check_branch
      %53 = sbr.rel (0) target = $region25
    $region24: #{tpu_custom_call.1} parent=1 // pred_region
      %55 = dma.done [#allocation12], 128
    $region25: #{tpu_custom_call.1} parent=1 // pred_fallthru
      _
    // Predicated region
    $region26: #{tpu_custom_call.1} parent=1 // pred_check
      _
    $region27: #{tpu_custom_call.1} parent=1 // pred_check_branch
      %57 = sbr.rel (0) target = $region29
    $region28: #{tpu_custom_call.1} parent=1 // pred_region
      %59 = dma.done [#allocation12], 128
    $region29: #{tpu_custom_call.1} parent=1 // pred_fallthru
      _
    %p60 = scmp.eq.s32.totalorder 0, 0
    // Predicated region
    $region30: #{tpu_custom_call.1} parent=1 // pred_check
      %p61 = pneg %p60
    $region31: #{tpu_custom_call.1} parent=1 // pred_check_branch
      %63 = sbr.rel (%p61) target = $region33
    $region32: #{tpu_custom_call.1} parent=1 // pred_region
      %v64 = vld [vmem:[#allocation13] sm:$0xff]
      %v65 = vmul.f32 %v64, %v64
      %vm66 = vcmask 261120
      %v67 = vsel %vm66, %v65, 0.0
      %68 = vadd.xlane.f32.xlu0 %v67
      %v69 = vpop.xlane.xlu0 %68
      %v70 = vmax.f32 %v69, 1e-24
      %v71 = vrsqrt.pop %v70
      %v72 = vmul.f32 %v71, %v70
      %v73 = vmul.f32 %v72, %v71
      %v74 = vmul.f32 0.5, %v73
      %v75 = vsub.f32 1.5, %v74
      %v76 = vmul.f32 %v71, %v75
      %vm77 = vweird.f32 %v70
      %vm78 = vweird.f32 %v71
      %vm79 = vmor %vm77, %vm78
      %v80 = vsel %vm79, %v71, %v76
      %v81 = vmul.f32 %v64, %v80
      %82 = vst.msk [vmem:[#allocation2] sm:$0xff] %vm66, %v81
      %vm83 = vcmask 57344
      %84 = vst.msk [vmem:[#allocation4] sm:$0x1] %vm83, 0.0
      %vm85 = vcmask 0
      %86 = vst.msk [vmem:[#allocation5] sm:$0x1] %vm85, 0.0
      %87 = vst.msk [vmem:[#allocation6] sm:$0x1] %vm85, 0.0
    $region33: #{tpu_custom_call.1} parent=1 // pred_fallthru
      _
    %s88 = sld [smem:[#allocation7]]
    %v89 = vld [vmem:[#allocation8] sm:$0xff]
    %v90 = vmul.f32 %v89, %v89
    %vm91 = vcmask 261120
    %v92 = vsel %vm91, %v90, 0.0
    %93 = vadd.xlane.f32.xlu0 %v92
    %v94 = vpop.xlane.xlu0 %93
    %v95 = vmax.f32 %v94, 1e-24
    %v96 = vrsqrt.pop %v95
    %v97 = vmul.f32 %v96, %v95
    %v98 = vmul.f32 %v97, %v96
    %v99 = vmul.f32 0.5, %v98
    %v100 = vsub.f32 1.5, %v99
    %v101 = vmul.f32 %v96, %v100
    %vm102 = vweird.f32 %v95
    %vm103 = vweird.f32 %v96
    %vm104 = vmor %vm102, %vm103
    %v105 = vsel %vm104, %v96, %v101
    %v106 = vmul.f32 %v105, 10.0
    %v107 = vmul.f32 %v89, %v106
    %v108 = vld [vmem:[#allocation11] sm:$0xff]
    %v109 = vmul.f32 %v108, %v108
    %v110 = vsel %vm91, %v109, 0.0
    %111 = vadd.xlane.f32.xlu0 %v110
    %v112 = vpop.xlane.xlu0 %111
    %v113 = vmax.f32 %v112, 1e-24
    %v114 = vrsqrt.pop %v113
    %v115 = vmul.f32 %v114, %v113
    %v116 = vmul.f32 %v115, %v114
    %v117 = vmul.f32 0.5, %v116
    %v118 = vsub.f32 1.5, %v117
    %v119 = vmul.f32 %v114, %v118
    %vm120 = vweird.f32 %v113
    %vm121 = vweird.f32 %v114
    %vm122 = vmor %vm120, %vm121
    %v123 = vsel %vm122, %v114, %v119
    %v124 = vmul.f32 %v108, %v123
    %v125 = vld [vmem:[#allocation2] sm:$0xff]
    %v126 = vmul.f32 %v124, %v125
    %v127 = vsel %vm91, %v126, 0.0
    %128 = vadd.xlane.f32.xlu0 %v127
    %v129 = vpop.xlane.xlu0 %128
    %v130 = vstv %s88
    %v131 = vsub.f32 %v129, %v130
    %v132 = vmul.f32 %v131, 10.0
    %v133 = vmul.f32 %v132, 1.442695
    %v134 = vpow.pop %v133
    %vm135 = vcmask 7168
    %136 = vst.msk [vmem:[#allocation3] sm:$0xff] %vm135, %v132
    %v138 = vsel %vm91, %v107, 0
    %v141 = vsel %vm91, %v125, 0
    %143 = vmatpush.xpose.msra.mxu0 0.0
    %144 = vmatpush.xpose.msra.mxu0 0.0
    %145 = vmatpush.xpose.msra.mxu0 0.0
    %146 = vmatpush.xpose.msra.mxu0 0.0
    %147 = vmatpush.xpose.msra.mxu0 0.0
    %148 = vmatpush.xpose.msra.mxu0 0.0
    %149 = vmatpush.xpose.msra.mxu0 0.0
    %150 = vmatpush.xpose.msra.mxu0 0.0
    %151 = vmatpush.xpose.msra.mxu0 0.0
    %152 = vmatpush.xpose.msra.mxu0 0.0
    %153 = vmatpush.xpose.msra.mxu0 0.0
    %154 = vmatpush.xpose.msra.mxu0 0.0
    %155 = vmatpush.xpose.msra.mxu0 0.0
    %156 = vmatpush.xpose.msra.mxu0 0.0
    %157 = vmatpush.xpose.msra.mxu0 0.0
    %158 = vmatpush.xpose.msra.mxu0 %v141
    %159 = vmatmul.f32.gmra.mxu0 %v138
    %v160 = vpop.f32.mrf.mxu0
    %v161 = vadd.f32 0.0, %v160
    %162 = vdwg.mxu0
    %v163 = vmul.f32 %v161, 1.442695
    %v164 = vpow.pop %v163
    %vm165 = vcmask 64512
    %v166 = vsel %vm165, %v164, 0.0
    %167 = vadd.xlane.f32.xlu0 %v166
    %v168 = vpop.xlane.xlu0 %167
    %v169 = vrot.slane %v166, 4
    %v170 = vadd.f32 %v166, %v169
    %v171 = vrot.slane %v170, 2
    %v172 = vadd.f32 %v170, %v171
    %v173 = vrot.slane %v172, 1
    %v174 = vadd.f32 %v172, %v173
    %v175 = vld [vmem:[#allocation4] sm:$0x1]
    %v176 = vadd.f32 %v175, %v174
    %vm177 = vcmask 57344
    %178 = vst.msk [vmem:[#allocation4] sm:$0x1] %vm177, %v176
    %v179 = vadd.f32 %v168, %v134
    %v180 = vlog2.pop %v179
    %v181 = vmul.f32 %v180, 0.6931472
    %v182 = vsub.f32 %v181, %v132
    %v183 = vld [vmem:[#allocation5] sm:$0x1]
    %v184 = vrot.slane %v182, 4
    %v185 = vadd.f32 %v182, %v184
    %v186 = vrot.slane %v185, 2
    %v187 = vadd.f32 %v185, %v186
    %v188 = vrot.slane %v187, 1
    %v189 = vadd.f32 %v187, %v188
    %v190 = vadd.f32 %v183, %v189
    %vm191 = vcmask 0
    %192 = vst.msk [vmem:[#allocation5] sm:$0x1] %vm191, %v190
    %v193 = vld [vmem:[#allocation6] sm:$0x1]
    %v194 = vrot.slane %v132, 4
    %v195 = vadd.f32 %v132, %v194
    %v196 = vrot.slane %v195, 2
    %v197 = vadd.f32 %v195, %v196
    %v198 = vrot.slane %v197, 1
    %v199 = vadd.f32 %v197, %v198
    %v200 = vadd.f32 %v193, %v199
    %201 = vst.msk [vmem:[#allocation6] sm:$0x1] %vm191, %v200
    // Predicated region
    $region34: #{tpu_custom_call.1} parent=1 // pred_check
      %p202 = pneg %p60
    $region35: #{tpu_custom_call.1} parent=1 // pred_check_branch
      %204 = sbr.rel (%p202) target = $region37
    $region36: #{tpu_custom_call.1} parent=1 // pred_region
      %v205 = vld [vmem:[#allocation4] sm:$0x1]
      %v206 = vld [vmem:[#allocation3] sm:$0xff]
      %207 = vxpose.xlu0.b32.start [1/16] %v206, 128
      %208 = vxpose.xlu0.b32.cont [2/16] 0.0, 128
      %209 = vxpose.xlu0.b32.cont [3/16] 0.0, 128
      %210 = vxpose.xlu0.b32.cont [4/16] 0.0, 128
      %211 = vxpose.xlu0.b32.cont [5/16] 0.0, 128
      %212 = vxpose.xlu0.b32.cont [6/16] 0.0, 128
      %213 = vxpose.xlu0.b32.cont [7/16] 0.0, 128
      %214 = vxpose.xlu0.b32.cont [8/16] 0.0, 128
      %215 = vxpose.xlu0.b32.cont [9/16] 0.0, 128
      %216 = vxpose.xlu0.b32.cont [10/16] 0.0, 128
      %217 = vxpose.xlu0.b32.cont [11/16] 0.0, 128
      %218 = vxpose.xlu0.b32.cont [12/16] 0.0, 128
      %219 = vxpose.xlu0.b32.cont [13/16] 0.0, 128
      %220 = vxpose.xlu0.b32.cont [14/16] 0.0, 128
      %221 = vxpose.xlu0.b32.cont [15/16] 0.0, 128
      %222 = vxpose.xlu0.b32.end [16/16] 0.0, 128
      %v223 = vpop.trf.xlu0
      %v224 = vpop.trf.xlu0
      %v225 = vpop.trf.xlu0
      %v226 = vpop.trf.xlu0
      %v227 = vpop.trf.xlu0
      %v228 = vpop.trf.xlu0
      %v229 = vpop.trf.xlu0
      %v230 = vpop.trf.xlu0
      %v231 = vpop.trf.xlu0
      %v232 = vpop.trf.xlu0
      %v233 = vpop.trf.xlu0
      %v234 = vpop.trf.xlu0
      %v235 = vpop.trf.xlu0
      %v236 = vpop.trf.xlu0
      %v237 = vpop.trf.xlu0
      %v238 = vpop.trf.xlu0
      %v239 = vmul.f32 %v223, 1.442695
      %v240 = vpow.pop %v239
      %v241 = vadd.f32 %v205, %v240
      %v242 = vlog2.pop %v241
      %v243 = vmul.f32 %v242, 0.6931472
      %v244 = vld [vmem:[#allocation5] sm:$0x1]
      %v245 = vsel %vm177, %v243, 0.0
      %246 = vadd.xlane.f32.xlu0 %v245
      %v247 = vpop.xlane.xlu0 %246
      %v248 = vadd.f32 %v244, %v247
      %v249 = vld [vmem:[#allocation6] sm:$0x1]
      %v250 = vsub.f32 %v248, %v249
      %v251 = vadd.f32 %v250, 0.0
      %s252 = vtos %v251
      %s253 = smul.f32 %s252, 0.0625
      %s254 = scalar_lea.smem [#allocation14], 0
      %255 = sst [smem:[%s254]] %s253
    $region37: #{tpu_custom_call.1} parent=1 // pred_fallthru
      _
    // Predicated region
    $region38: #{tpu_custom_call.1} parent=1 // pred_check
      _
    $region39: #{tpu_custom_call.1} parent=1 // pred_check_branch
      %257 = sbr.rel (0) target = $region41
    $region40: #{tpu_custom_call.1} parent=1 // pred_region
      %259 = vsyncadd [#allocation10], 0
      %s261 = sshll.u32 %s4, 4
      %s262 = int_to_ptr.hbm [resolvable:$true] %s261
      %264 = dma.smem_to_hbm [#allocation14], 16, %s262, [#allocation10]
    $region41: #{tpu_custom_call.1} parent=1 // pred_fallthru
      _
    // Predicated region
    $region42: #{tpu_custom_call.1} parent=1 // pred_check
      _
    $region43: #{tpu_custom_call.1} parent=1 // pred_check_branch
      %266 = sbr.rel (0) target = $region45
    $region44: #{tpu_custom_call.1} parent=1 // pred_region
      %268 = dma.done [#allocation10], 16
    $region45: #{tpu_custom_call.1} parent=1 // pred_fallthru
      _
    %269 = sfence
    %270 = vsyncpa [#allocation9], 1
    %271 = vsyncpa [#allocation12], 1
    %272 = vsyncpa [#allocation10], 1

</llo_original>
